<compile_context>
chip_gen: v6e
topology: v6e:2x2x1
jax: 0.10.0
libtpu: 0.0.40
codegen_flags: <defaults>
</compile_context>

<pallas_src>
import jax
import jax.numpy as jnp
from jax.experimental import pallas as pl
from jax.experimental.pallas import tpu as pltpu


def _multiply_kernel(x_ref, attn_ref, o_ref):
    # Numerically-stable softmax over the last (feature) axis, in f32.
    x = x_ref[...].astype(jnp.float32)
    m = jnp.max(x, axis=-1, keepdims=True)
    e = jnp.exp(x - m)
    s = jnp.sum(e, axis=-1, keepdims=True)
    # EUP approximate reciprocal (otherwise-idle slot) + one Newton-Raphson
    # refinement so the result keeps full f32 accuracy (s >= 1 always).
    r = pl.reciprocal(s, approx=True)
    r = r * (2.0 - s * r)
    sm = e * r
    # Multiply in f32, cast exactly once to the output dtype.
    o_ref[...] = (sm * attn_ref[...].astype(jnp.float32)).astype(o_ref.dtype)


_LANE = 128
_VMEM_WORKING_SET_TARGET = 12 * 1024 * 1024   # I/O double-buffers + f32 temps
_VMEM_LIMIT_DEFAULT = 32 * 1024 * 1024        # safe scoped limit on v5e/v6e/v7x
_VMEM_LIMIT_MAX = 64 * 1024 * 1024            # never exceed v7x physical VMEM


def _round_up(v, m):
    return ((v + m - 1) // m) * m


def multiply(x, attention_x, *, block_rows=None):
    """softmax(x, axis=-1) * attention_x as a batch-tiled Pallas TPU kernel."""
    assert x.shape == attention_x.shape, "x and attentionX must have equal shapes"
    assert x.ndim == 2, "module forward implies a 2-D (batch, features) input"
    B, F = x.shape
    out_dtype = jnp.result_type(x.dtype, attention_x.dtype)

    # --- Lane-dense feature axis: pad F to a multiple of 128 so output stores
    # are full, unmasked vst's.  Padded x columns get -inf (softmax weight 0);
    # padded attn columns get 0.  Output is sliced back afterwards.
    F_pad = _round_up(F, _LANE)
    if F_pad != F:
        pad = ((0, 0), (0, F_pad - F))
        x_in = jnp.pad(x, pad, constant_values=-jnp.inf)
        a_in = jnp.pad(attention_x, pad, constant_values=0)
    else:
        x_in, a_in = x, attention_x

    itm_x = jnp.dtype(x.dtype).itemsize
    itm_a = jnp.dtype(attention_x.dtype).itemsize
    itm_o = jnp.dtype(out_dtype).itemsize

    # Sublane packing granularity is dtype dependent (f32: 8, bf16: 16, int8: 32).
    min_itemsize = max(1, min(itm_x, itm_a, itm_o))
    sublane = 8 * (4 // min_itemsize)

    # --- VMEM working set per row of a block:
    #   * the three I/O buffers, each double-buffered by the pipeline
    #   * ~3 f32 temporaries created in the body (x_f32, e, softmax)
    io_bytes_per_row = 2 * F_pad * (itm_x + itm_a + itm_o)
    tmp_bytes_per_row = 3 * F_pad * 4
    bytes_per_row = max(1, io_bytes_per_row + tmp_bytes_per_row)

    if block_rows is None:
        block_rows = max(sublane, _VMEM_WORKING_SET_TARGET // bytes_per_row)
        # Keep the pipeline busy (and both v7x TensorCores fed): aim for >=4
        # grid steps when the batch is large enough, >=2 otherwise.
        if B >= 4 * sublane:
            desired_steps = 4
        elif B >= 2 * sublane:
            desired_steps = 2
        else:
            desired_steps = 1
        if desired_steps > 1:
            cap = _round_up(pl.cdiv(B, desired_steps), sublane)
            block_rows = min(block_rows, cap)

    if B <= block_rows or B <= sublane:
        block_rows = B                                     # single full-extent block
    else:
        block_rows = max(sublane, (block_rows // sublane) * sublane)
    grid = (pl.cdiv(B, block_rows),)

    # --- Scoped VMEM budget: 32 MiB is safe on every generation; only raise
    # (capped at v7x's 64 MiB physical) if a single minimal block needs it.
    needed = block_rows * bytes_per_row
    vmem_limit = int(min(max(_VMEM_LIMIT_DEFAULT, needed * 5 // 4), _VMEM_LIMIT_MAX))
    # TODO(synk): for extremely wide F where even a `sublane`-row block exceeds
    # 64 MiB, tile the feature axis with a two-pass / online-softmax variant.

    row_spec = pl.BlockSpec((block_rows, F_pad), lambda i: (i, 0))

    cost = pl.CostEstimate(
        flops=6 * B * F_pad,
        transcendentals=B * F_pad,
        bytes_accessed=B * F_pad * (itm_x + itm_a + itm_o),
    )

    out = pl.pallas_call(
        _multiply_kernel,
        out_shape=jax.ShapeDtypeStruct((B, F_pad), out_dtype),
        grid=grid,
        in_specs=[row_spec, row_spec],
        out_specs=row_spec,
        compiler_params=pltpu.CompilerParams(
            # Row blocks are fully independent -> shard across both TCs on v7x.
            dimension_semantics=("parallel",),
            vmem_limit_bytes=vmem_limit),
        cost_estimate=cost,
    )(x_in, a_in)

    if F_pad != F:
        out = out[:, :F]
    return out


def _reference(x, attention_x):
    return jax.nn.softmax(x.astype(jnp.float32), axis=-1) * attention_x.astype(
        jnp.float32)


if __name__ == "__main__":
    key = jax.random.PRNGKey(0)
    kx, ka, kx2, ka2 = jax.random.split(key, 4)

    # Small (batch, features) consistent with the module's 2-D forward.
    # F=32 exercises the lane-padding (32 -> 128) path.
    B, F = 8, 32
    x = jax.random.normal(kx, (B, F), dtype=jnp.float32)
    attention_x = jax.random.normal(ka, (B, F), dtype=jnp.float32)
    out = jax.block_until_ready(multiply(x, attention_x))
    ref = _reference(x, attention_x)
    assert out.shape == (B, F)
    assert jnp.allclose(out, ref, atol=1e-5, rtol=1e-5), "mismatch (small case)"

    # Larger batch with an explicit tile size to exercise the multi-block,
    # software-pipelined path (grid = 4 row blocks of 16).
    B2, F2 = 64, 256
    x2 = jax.random.normal(kx2, (B2, F2), dtype=jnp.float32)
    attention_x2 = jax.random.normal(ka2, (B2, F2), dtype=jnp.float32)
    out2 = jax.block_until_ready(multiply(x2, attention_x2, block_rows=16))
    ref2 = _reference(x2, attention_x2)
    assert out2.shape == (B2, F2)
    assert jnp.allclose(out2, ref2, atol=1e-5, rtol=1e-5), "mismatch (tiled case)"

    # Auto-tiling path on a larger batch (heuristic picks block_rows, >=4 steps).
    B3, F3 = 512, 384
    x3 = jax.random.normal(kx, (B3, F3), dtype=jnp.float32)
    attention_x3 = jax.random.normal(ka, (B3, F3), dtype=jnp.float32)
    out3 = jax.block_until_ready(multiply(x3, attention_x3))
    ref3 = _reference(x3, attention_x3)
    assert out3.shape == (B3, F3)
    assert jnp.allclose(out3, ref3, atol=1e-5, rtol=1e-5), "mismatch (auto case)"

    print("KERNEL_OK")
</pallas_src>

<mosaic_0001>
module attributes {stable_mosaic.version = 11 : i64} {
  func.func @_multiply_kernel(%arg0: i32, %arg1: memref<8x128xf32, #tpu.memory_space<vmem>>, %arg2: memref<8x128xf32, #tpu.memory_space<vmem>>, %arg3: memref<8x128xf32, #tpu.memory_space<vmem>>) attributes {dimension_semantics = [#tpu.dimension_semantics<parallel>], iteration_bounds = array<i64: 1>, scalar_prefetch = 0 : i64, scratch_operands = 0 : i64, tpu.core_type = #tpu.core_type<tc>, window_params = [{transform_indices = @transform_0, window_bounds = array<i64: 8, 128>}, {transform_indices = @transform_1, window_bounds = array<i64: 8, 128>}, {transform_indices = @transform_2, window_bounds = array<i64: 8, 128>}]} {
    %c0 = arith.constant 0 : index
    %c0_0 = arith.constant 0 : index
    %0 = vector.load %arg1[%c0, %c0_0] : memref<8x128xf32, #tpu.memory_space<vmem>>, vector<8x128xf32>
    %cst = arith.constant dense<0xFF800000> : vector<8xf32>
    %1 = vector.multi_reduction <maximumf>, %0, %cst [1] : vector<8x128xf32> to vector<8xf32>
    %2 = vector.shape_cast %1 : vector<8xf32> to vector<8x1xf32>
    %3 = vector.broadcast %2 : vector<8x1xf32> to vector<8x128xf32>
    %4 = arith.subf %0, %3 : vector<8x128xf32>
    %5 = math.exp %4 : vector<8x128xf32>
    %cst_1 = arith.constant dense<0.000000e+00> : vector<8xf32>
    %6 = vector.multi_reduction <add>, %5, %cst_1 [1] : vector<8x128xf32> to vector<8xf32>
    %7 = vector.shape_cast %6 : vector<8xf32> to vector<8x1xf32>
    %8 = tpu.reciprocal %7 {approx = true} : vector<8x1xf32> -> vector<8x1xf32>
    %9 = arith.mulf %7, %8 : vector<8x1xf32>
    %cst_2 = arith.constant 2.000000e+00 : f32
    %10 = vector.broadcast %cst_2 : f32 to vector<8x1xf32>
    %11 = arith.subf %10, %9 : vector<8x1xf32>
    %12 = arith.mulf %8, %11 : vector<8x1xf32>
    %13 = vector.broadcast %12 : vector<8x1xf32> to vector<8x128xf32>
    %14 = arith.mulf %5, %13 : vector<8x128xf32>
    %c0_3 = arith.constant 0 : index
    %c0_4 = arith.constant 0 : index
    %15 = vector.load %arg2[%c0_3, %c0_4] : memref<8x128xf32, #tpu.memory_space<vmem>>, vector<8x128xf32>
    %16 = arith.mulf %14, %15 : vector<8x128xf32>
    %c0_5 = arith.constant 0 : index
    %c0_6 = arith.constant 0 : index
    %17 = vector.load %arg3[%c0_5, %c0_6] : memref<8x128xf32, #tpu.memory_space<vmem>>, vector<8x128xf32>
    tpu.vector_store %arg3[%c0_5, %c0_6], %16 {strides = array<i32>} : memref<8x128xf32, #tpu.memory_space<vmem>>, vector<8x128xf32>,
    return
  }
  func.func @transform_0(%arg0: i32) -> (i32, i32) {
    %c0_i32 = arith.constant 0 : i32
    %c0_i32_0 = arith.constant 0 : i32
    return %arg0, %c0_i32 : i32, i32
  }
  func.func @transform_1(%arg0: i32) -> (i32, i32) {
    %c0_i32 = arith.constant 0 : i32
    %c0_i32_0 = arith.constant 0 : i32
    return %arg0, %c0_i32 : i32, i32
  }
  func.func @transform_2(%arg0: i32) -> (i32, i32) {
    %c0_i32 = arith.constant 0 : i32
    %c0_i32_0 = arith.constant 0 : i32
    return %arg0, %c0_i32 : i32, i32
  }
}

</mosaic_0001>

<llo_original>
// kernel: tpu_custom_call.1
$region0: #{tpu_custom_call.1}
  #allocation0 [shape = 'u32[]', space=smem, size = 0x4, offset = 0x4, fixed_abs, tag = 'smem constant byte address 0x4 - core index']
  #allocation1 [shape = 'u32[144,128]{1,0:T(1,128)}', space=vmem, size = 0x12000, scoped, tag = 'internal scratch']
  %s0 = inlined_call_operand.hbm [shape: f32[8,128], index: 0, kind: input, shape index: {}]
  %s1 = inlined_call_operand.hbm [shape: f32[8,128], index: 1, kind: input, shape index: {}]
  %s2 = inlined_call_operand.hbm [shape: f32[8,128], index: 2, kind: output, shape index: {}]
  %s3 = sld [smem:[#allocation0]]
  $region26: #{tpu_custom_call.1} parent=0
    _
  %s5 = ssub.s32 1, %s3
  %s6 = scalar_select 0, %s5, %s3
  $region1: #{tpu_custom_call.1} parent=0
    #allocation2 [shape = 'u8[4096]{0}', space=vmem, size = 0x1000, scoped, tag = 'input window, operand 0, single buffered']
    #allocation3 [shape = 's32[1]{0}', space=sflag, size = 0x4, scoped, tag = 'scoped memory for tpu_custom_call.1']
    #allocation4 [shape = 's32[1]{0}', space=sflag, size = 0x4, scoped, tag = 'scoped memory for tpu_custom_call.1']
    #allocation5 [shape = 'u8[4096]{0}', space=vmem, size = 0x1000, scoped, tag = 'input window, operand 1, single buffered']
    #allocation6 [shape = 's32[1]{0}', space=sflag, size = 0x4, scoped, tag = 'scoped memory for tpu_custom_call.1']
    #allocation7 [shape = 'u8[4096]{0}', space=vmem, size = 0x1000, scoped, tag = 'output window, operand 0, single buffered']
    %7 = vsyncpa [#allocation3], 0
    %8 = vsyncpa [#allocation6], 0
    %9 = vsyncpa [#allocation4], 0
    // Predicated region
    $region2: #{tpu_custom_call.1} parent=1 // pred_check
      _
    $region3: #{tpu_custom_call.1} parent=1 // pred_check_branch
      %11 = sbr.rel (0) target = $region5
    $region4: #{tpu_custom_call.1} parent=1 // pred_region
      %s13 = ssub.s32 128, 128
      %14 = vsyncadd [#allocation3], %s13
      %s16 = sshll.u32 [#allocation2], 4
      %s17 = int_to_ptr.vmem [resolvable:$true] %s16
      %19 = dma.hbm_to_vmem [thread:$0]  %s0, 128, %s17, [#allocation3]
    $region5: #{tpu_custom_call.1} parent=1 // pred_fallthru
      _
    // Predicated region
    $region6: #{tpu_custom_call.1} parent=1 // pred_check
      _
    $region7: #{tpu_custom_call.1} parent=1 // pred_check_branch
      %21 = sbr.rel (0) target = $region9
    $region8: #{tpu_custom_call.1} parent=1 // pred_region
      %s23 = ssub.s32 128, 128
      %24 = vsyncadd [#allocation6], %s23
      %s26 = sshll.u32 [#allocation5], 4
      %s27 = int_to_ptr.vmem [resolvable:$true] %s26
      %29 = dma.hbm_to_vmem [thread:$0]  %s1, 128, %s27, [#allocation6]
    $region9: #{tpu_custom_call.1} parent=1 // pred_fallthru
      _
    // Predicated region
    $region10: #{tpu_custom_call.1} parent=1 // pred_check
      _
    $region11: #{tpu_custom_call.1} parent=1 // pred_check_branch
      %31 = sbr.rel (0) target = $region13
    $region12: #{tpu_custom_call.1} parent=1 // pred_region
      %32 = dma.done [#allocation3], 128
    $region13: #{tpu_custom_call.1} parent=1 // pred_fallthru
      _
    // Predicated region
    $region14: #{tpu_custom_call.1} parent=1 // pred_check
      _
    $region15: #{tpu_custom_call.1} parent=1 // pred_check_branch
      %34 = sbr.rel (0) target = $region17
    $region16: #{tpu_custom_call.1} parent=1 // pred_region
      %35 = dma.done [#allocation6], 128
    $region17: #{tpu_custom_call.1} parent=1 // pred_fallthru
      _
    %v36 = vld [vmem:[#allocation2] sm:$0xff]
    %37 = vmax.xlane.f32.xlu0 %v36
    %v38 = vpop.xlane.xlu0 %37
    %v39 = vsub.f32 %v36, %v38
    %v40 = vmul.f32 %v39, 1.442695
    %v41 = vpow.pop %v40
    %42 = vadd.xlane.f32.xlu0 %v41
    %v43 = vpop.xlane.xlu0 %42
    %v44 = vrcp.pop %v43
    %v45 = vmul.f32 %v43, %v44
    %v46 = vsub.f32 2.0, %v45
    %v47 = vmul.f32 %v44, %v46
    %v48 = vmul.f32 %v41, %v47
    %v49 = vld [vmem:[#allocation5] sm:$0xff]
    %v50 = vmul.f32 %v48, %v49
    %51 = vst [vmem:[#allocation7] sm:$0xff] %v50
    // Predicated region
    $region18: #{tpu_custom_call.1} parent=1 // pred_check
      _
    $region19: #{tpu_custom_call.1} parent=1 // pred_check_branch
      %53 = sbr.rel (0) target = $region21
    $region20: #{tpu_custom_call.1} parent=1 // pred_region
      %s55 = ssub.s32 128, 128
      %56 = vsyncadd [#allocation4], %s55
      %s58 = sshll.u32 [#allocation7], 4
      %s59 = int_to_ptr.vmem [resolvable:$true] %s58
      %61 = dma.vmem_to_hbm [thread:$0]  %s59, 128, %s2, [#allocation4]
    $region21: #{tpu_custom_call.1} parent=1 // pred_fallthru
      _
    // Predicated region
    $region22: #{tpu_custom_call.1} parent=1 // pred_check
      _
    $region23: #{tpu_custom_call.1} parent=1 // pred_check_branch
      %63 = sbr.rel (0) target = $region25
    $region24: #{tpu_custom_call.1} parent=1 // pred_region
      %64 = dma.done [#allocation4], 128
    $region25: #{tpu_custom_call.1} parent=1 // pred_fallthru
      _
    %65 = vsyncpa [#allocation3], 1
    %66 = vsyncpa [#allocation6], 1
    %67 = vsyncpa [#allocation4], 1

</llo_original>
